<compile_context>
chip_gen: v7x
topology: tpu7x:2x2x1
jax: 0.10.0
libtpu: 0.0.40
codegen_flags: <defaults>
</compile_context>

<pallas_src>
import functools

import jax
import jax.numpy as jnp
from jax.experimental import pallas as pl
from jax.experimental.pallas import tpu as pltpu

EPS = 1e-5


# ---------------------------------------------------------------------------
# Kernel bodies
# ---------------------------------------------------------------------------

def _fold_stats(stats, gamma, beta, inv_n):
    """Fold (sum, sumsq) batch statistics into a per-feature (scale, shift)."""
    mean = stats[0:1, :] * inv_n
    # Clamp: E[h^2] - E[h]^2 can go slightly negative in f32 when |mean| >> std.
    var = jnp.maximum(stats[1:2, :] * inv_n - mean * mean, 0.0)
    scale = gamma * jax.lax.rsqrt(var + EPS)          # EUP rsqrt
    shift = beta - mean * scale
    return scale, shift


def _accum_stats(stats_ref, h):
    """Accumulate per-feature sum / sum-of-squares into the grid-resident stats output."""
    @pl.when(pl.program_id(0) == 0)
    def _():
        stats_ref[...] = jnp.zeros_like(stats_ref)
    s = jnp.sum(h, axis=0, keepdims=True)
    ss = jnp.sum(h * h, axis=0, keepdims=True)
    stats_ref[...] += jnp.concatenate([s, ss], axis=0)


def _linear_stats_kernel(x_ref, w_ref, h_ref, stats_ref):
    """h = x @ W (bias dropped; cancelled by BN), plus BN statistics of h."""
    h = jnp.dot(x_ref[...].astype(jnp.bfloat16), w_ref[...],
                preferred_element_type=jnp.float32)
    h_ref[...] = h
    _accum_stats(stats_ref, h)


def _bn_act_linear_stats_kernel(hp_ref, stp_ref, g_ref, b_ref, w_ref,
                                h_ref, stats_ref, *, inv_n, relu):
    """a = [relu](BN(h_prev)); h = a @ W; plus BN statistics of h."""
    scale, shift = _fold_stats(stp_ref[...], g_ref[...], b_ref[...], inv_n)
    a = hp_ref[...] * scale + shift                   # one mul + one add per element
    if relu:
        a = jnp.maximum(a, 0.0)
    h = jnp.dot(a.astype(jnp.bfloat16), w_ref[...],
                preferred_element_type=jnp.float32)
    h_ref[...] = h
    _accum_stats(stats_ref, h)


def _bn_kernel(hp_ref, stp_ref, g_ref, b_ref, o_ref, *, inv_n):
    """Final BatchNorm (no ReLU)."""
    scale, shift = _fold_stats(stp_ref[...], g_ref[...], b_ref[...], inv_n)
    o_ref[...] = (hp_ref[...] * scale + shift).astype(o_ref.dtype)


# ---------------------------------------------------------------------------
# Wrapper
# ---------------------------------------------------------------------------

def _vmem_budget_bytes():
    """Generation-aware VMEM budget (v5e/v6e: 128 MiB, v7x: 64 MiB) with headroom."""
    try:
        cap = getattr(pltpu.get_tpu_info(), "vmem_capacity_bytes", None)
        if cap:
            return int(cap) * 3 // 4
    except Exception:
        pass
    return 48 << 20  # safe fallback: fits every generation


def _pick_batch_tile(B, F, L, budget):
    """Largest batch tile dividing B whose per-step working set fits comfortably."""
    width = max(F, L)
    for tb in (1024, 512, 256, 128, 64, 32, 16, 8):
        if B % tb:
            continue
        work = (2 * tb * F * 4          # x / h_prev block, double-buffered, f32
                + 2 * tb * L * 4        # h output block, double-buffered, f32
                + F * L * 2             # weight tile (resident, bf16)
                + 4 * tb * width * 4)   # f32 intermediates + bf16 copies
        if work <= budget // 2:
            return tb
    return 8


def projector_forward(x, params, *, batch_tile=None, out_dtype=jnp.float32):
    """x: [B, feature_dim] float32. params: see init_params (weights [in, out], bf16)."""
    B, F = x.shape
    L = params["w3"].shape[1]
    assert F % 128 == 0 and L % 128 == 0, "feature/latent dims must be multiples of 128"
    assert B % 8 == 0, "batch must be a multiple of 8"

    budget = _vmem_budget_bytes()
    tb = batch_tile or _pick_batch_tile(B, F, L, budget)
    assert B % tb == 0 and tb % 8 == 0, "batch tile must divide B and be a multiple of 8"
    n_tiles = B // tb
    inv_n = 1.0 / B

    cp_arb = pltpu.CompilerParams(dimension_semantics=("arbitrary",),
                                  vmem_limit_bytes=budget)
    cp_par = pltpu.CompilerParams(dimension_semantics=("parallel",),
                                  vmem_limit_bytes=budget)

    def tile_spec(width):
        return pl.BlockSpec((tb, width), lambda i: (i, 0))

    def full_spec(a):
        return pl.BlockSpec(a.shape, lambda i: (0, 0))

    def stats_spec():
        return pl.BlockSpec((2, L), lambda i: (0, 0))   # grid-resident accumulator

    stats_shape = jax.ShapeDtypeStruct((2, L), jnp.float32)
    h_shape = jax.ShapeDtypeStruct((B, L), jnp.float32)

    # Layer 1: x @ W1 (streamed over batch tiles) + BN statistics of h1.
    h1, st1 = pl.pallas_call(
        _linear_stats_kernel,
        grid=(n_tiles,),
        in_specs=[tile_spec(F), full_spec(params["w1"])],
        out_specs=(tile_spec(L), stats_spec()),
        out_shape=(h_shape, stats_shape),
        compiler_params=cp_arb,
    )(x, params["w1"])

    # Layers 2 and 3: BN(+ReLU) of the previous layer fused with the next matmul.
    def bn_act_linear(h_prev, st_prev, gamma, beta, w, relu):
        kern = functools.partial(_bn_act_linear_stats_kernel, inv_n=inv_n, relu=relu)
        return pl.pallas_call(
            kern,
            grid=(n_tiles,),
            in_specs=[tile_spec(L), stats_spec(),
                      full_spec(gamma), full_spec(beta), full_spec(w)],
            out_specs=(tile_spec(L), stats_spec()),
            out_shape=(h_shape, stats_shape),
            compiler_params=cp_arb,
        )(h_prev, st_prev, gamma, beta, w)

    h2, st2 = bn_act_linear(h1, st1, params["g1"], params["be1"], params["w2"], True)
    h3, st3 = bn_act_linear(h2, st2, params["g2"], params["be2"], params["w3"], True)

    # Final BatchNorm (no ReLU), purely elementwise -> "parallel" batch axis.
    kern = functools.partial(_bn_kernel, inv_n=inv_n)
    out = pl.pallas_call(
        kern,
        grid=(n_tiles,),
        in_specs=[tile_spec(L), stats_spec(),
                  full_spec(params["g3"]), full_spec(params["be3"])],
        out_specs=tile_spec(L),
        out_shape=jax.ShapeDtypeStruct((B, L), out_dtype),
        compiler_params=cp_par,
    )(h3, st3, params["g3"], params["be3"])
    return out


# ---------------------------------------------------------------------------
# Params / reference
# ---------------------------------------------------------------------------

def init_params(key, feature_dim, latent_dim):
    """Synthetic init mirroring the PyTorch module.

    PyTorch stores Linear weight as [out, in]; here the transpose [in, out], bf16
    (matmul operand dtype). Biases are kept (f32) for the PyTorch-faithful reference,
    but the kernels do not use them (training-mode BN cancels them exactly).
    BN gamma=1, beta=0. NOTE: latent_dim multiples of 256 fill the v6e/v7x MXU better.
    """
    ks = jax.random.split(key, 6)

    def linear(kw, kb, fan_in, fan_out):
        bound = float(fan_in) ** -0.5
        w = jax.random.uniform(kw, (fan_in, fan_out), jnp.float32, -bound, bound)
        b = jax.random.uniform(kb, (1, fan_out), jnp.float32, -bound, bound)
        return w.astype(jnp.bfloat16), b

    w1, b1 = linear(ks[0], ks[1], feature_dim, latent_dim)
    w2, b2 = linear(ks[2], ks[3], latent_dim, latent_dim)
    w3, b3 = linear(ks[4], ks[5], latent_dim, latent_dim)

    ones = jnp.ones((1, latent_dim), jnp.float32)
    zeros = jnp.zeros((1, latent_dim), jnp.float32)

    return {
        "w1": w1, "b1": b1, "g1": ones, "be1": zeros,
        "w2": w2, "b2": b2, "g2": ones, "be2": zeros,
        "w3": w3, "b3": b3, "g3": ones, "be3": zeros,
    }


def projector_ref(x, p):
    """Pure-JAX reference with the original PyTorch semantics (biases included,
    two-pass BN). Same bf16 matmul operands for an apples-to-apples check."""
    def bn(h, g, b):
        m = jnp.mean(h, axis=0, keepdims=True)
        v = jnp.mean((h - m) ** 2, axis=0, keepdims=True)
        return (h - m) / jnp.sqrt(v + EPS) * g + b

    xb = x.astype(jnp.bfloat16)
    h = jnp.dot(xb, p["w1"], preferred_element_type=jnp.float32) + p["b1"]
    h = jax.nn.relu(bn(h, p["g1"], p["be1"]))
    h = jnp.dot(h.astype(jnp.bfloat16), p["w2"], preferred_element_type=jnp.float32) + p["b2"]
    h = jax.nn.relu(bn(h, p["g2"], p["be2"]))
    h = jnp.dot(h.astype(jnp.bfloat16), p["w3"], preferred_element_type=jnp.float32) + p["b3"]
    return bn(h, p["g3"], p["be3"])


if __name__ == "__main__":
    key = jax.random.PRNGKey(0)
    k_x, k_p = jax.random.split(key)

    # Small lane-dense shapes; batch_tile=128 forces 4 grid steps so the streamed
    # BN-statistics accumulator path is exercised (production sizes auto-pick bigger tiles).
    B, feature_dim, latent_dim = 512, 256, 128
    x = jax.random.normal(k_x, (B, feature_dim), jnp.float32)
    params = init_params(k_p, feature_dim, latent_dim)

    out = jax.block_until_ready(projector_forward(x, params, batch_tile=128))
    ref = projector_ref(x, params)

    assert out.shape == (B, latent_dim)
    max_err = float(jnp.max(jnp.abs(out - ref)))
    assert jnp.allclose(out, ref, atol=1e-2, rtol=1e-2), f"mismatch vs reference, max abs err={max_err}"

    print("KERNEL_OK")
</pallas_src>

<mosaic_0001>
module attributes {stable_mosaic.version = 11 : i64} {
  func.func @_linear_stats_kernel(%arg0: i32, %arg1: memref<128x256xf32, #tpu.memory_space<vmem>>, %arg2: memref<256x128xbf16, #tpu.memory_space<vmem>>, %arg3: memref<128x128xf32, #tpu.memory_space<vmem>>, %arg4: memref<2x128xf32, #tpu.memory_space<vmem>>) attributes {dimension_semantics = [#tpu.dimension_semantics<arbitrary>], iteration_bounds = array<i64: 4>, scalar_prefetch = 0 : i64, scratch_operands = 0 : i64, tpu.core_type = #tpu.core_type<tc>, window_params = [{transform_indices = @transform_0, window_bounds = array<i64: 128, 256>}, {pipeline_mode = #tpu.pipeline_mode<synchronous>, transform_indices = @transform_1, window_bounds = array<i64: 256, 128>}, {transform_indices = @transform_2, window_bounds = array<i64: 128, 128>}, {pipeline_mode = #tpu.pipeline_mode<synchronous>, transform_indices = @transform_3, window_bounds = array<i64: 2, 128>}]} {
    %c0 = arith.constant 0 : index
    %c0_0 = arith.constant 0 : index
    %0 = vector.load %arg1[%c0, %c0_0] : memref<128x256xf32, #tpu.memory_space<vmem>>, vector<128x256xf32>
    %1 = arith.truncf %0 : vector<128x256xf32> to vector<128x256xbf16>
    %c0_1 = arith.constant 0 : index
    %c0_2 = arith.constant 0 : index
    %2 = vector.load %arg2[%c0_1, %c0_2] : memref<256x128xbf16, #tpu.memory_space<vmem>>, vector<256x128xbf16>
    %cst = arith.constant dense<0.000000e+00> : vector<128x128xf32>
    %3 = tpu.matmul %1, %2, %cst {dimension_numbers = #tpu.dot_dimension_numbers<[1], [0], [0], [1], [0, 0, 1, 1], [], []>} : vector<128x256xbf16>, vector<256x128xbf16>, vector<128x128xf32> -> vector<128x128xf32>
    %c0_3 = arith.constant 0 : index
    %c0_4 = arith.constant 0 : index
    %4 = vector.load %arg3[%c0_3, %c0_4] : memref<128x128xf32, #tpu.memory_space<vmem>>, vector<128x128xf32>
    tpu.vector_store %arg3[%c0_3, %c0_4], %3 {strides = array<i32>} : memref<128x128xf32, #tpu.memory_space<vmem>>, vector<128x128xf32>,
    %c0_i32 = arith.constant 0 : i32
    %5 = arith.cmpi eq, %arg0, %c0_i32 : i32
    %6 = arith.extui %5 : i1 to i32
    %c0_i32_5 = arith.constant 0 : i32
    %7 = arith.cmpi ne, %6, %c0_i32_5 : i32
    scf.if %7 {
      %cst_12 = arith.constant 0.000000e+00 : f32
      %17 = vector.broadcast %cst_12 : f32 to vector<2x128xf32>
      %c0_13 = arith.constant 0 : index
      %c0_14 = arith.constant 0 : index
      %18 = vector.load %arg4[%c0_13, %c0_14] : memref<2x128xf32, #tpu.memory_space<vmem>>, vector<2x128xf32>
      tpu.vector_store %arg4[%c0_13, %c0_14], %17 {strides = array<i32>} : memref<2x128xf32, #tpu.memory_space<vmem>>, vector<2x128xf32>,
    } else {
    }
    %cst_6 = arith.constant dense<0.000000e+00> : vector<128xf32>
    %8 = vector.multi_reduction <add>, %3, %cst_6 [0] : vector<128x128xf32> to vector<128xf32>
    %9 = vector.shape_cast %8 : vector<128xf32> to vector<1x128xf32>
    %10 = arith.mulf %3, %3 : vector<128x128xf32>
    %cst_7 = arith.constant dense<0.000000e+00> : vector<128xf32>
    %11 = vector.multi_reduction <add>, %10, %cst_7 [0] : vector<128x128xf32> to vector<128xf32>
    %12 = vector.shape_cast %11 : vector<128xf32> to vector<1x128xf32>
    %c0_8 = arith.constant 0 : index
    %c0_9 = arith.constant 0 : index
    %13 = vector.load %arg4[%c0_8, %c0_9] : memref<2x128xf32, #tpu.memory_space<vmem>>, vector<2x128xf32>
    %14 = tpu.concatenate %9, %12 in 0 : vector<1x128xf32>, vector<1x128xf32> -> vector<2x128xf32>
    %15 = arith.addf %13, %14 : vector<2x128xf32>
    %c0_10 = arith.constant 0 : index
    %c0_11 = arith.constant 0 : index
    %16 = vector.load %arg4[%c0_10, %c0_11] : memref<2x128xf32, #tpu.memory_space<vmem>>, vector<2x128xf32>
    tpu.vector_store %arg4[%c0_10, %c0_11], %15 {strides = array<i32>} : memref<2x128xf32, #tpu.memory_space<vmem>>, vector<2x128xf32>,
    return
  }
  func.func @transform_0(%arg0: i32) -> (i32, i32) {
    %c0_i32 = arith.constant 0 : i32
    %c0_i32_0 = arith.constant 0 : i32
    return %arg0, %c0_i32 : i32, i32
  }
  func.func @transform_1(%arg0: i32) -> (i32, i32) {
    %c0_i32 = arith.constant 0 : i32
    %c0_i32_0 = arith.constant 0 : i32
    %c0_i32_1 = arith.constant 0 : i32
    return %c0_i32, %c0_i32_0 : i32, i32
  }
  func.func @transform_2(%arg0: i32) -> (i32, i32) {
    %c0_i32 = arith.constant 0 : i32
    %c0_i32_0 = arith.constant 0 : i32
    return %arg0, %c0_i32 : i32, i32
  }
  func.func @transform_3(%arg0: i32) -> (i32, i32) {
    %c0_i32 = arith.constant 0 : i32
    %c0_i32_0 = arith.constant 0 : i32
    %c0_i32_1 = arith.constant 0 : i32
    return %c0_i32, %c0_i32_0 : i32, i32
  }
}

</mosaic_0001>

<llo_original>
// kernel: tpu_custom_call.1
$region0: #{tpu_custom_call.1}
  #allocation0 [shape = 'u32[]', space=smem, size = 0x4, offset = 0x4, fixed_abs, tag = 'smem constant byte address 0x4 - core index']
  #allocation1 [shape = 'u32[144,128]{1,0:T(1,128)}', space=vmem, size = 0x12000, scoped, tag = 'internal scratch']
  %s0 = inlined_call_operand.hbm [shape: f32[512,256], index: 0, kind: input, shape index: {}]
  %s1 = inlined_call_operand.hbm [shape: bf16[256,128], index: 1, kind: input, shape index: {}]
  %s2 = inlined_call_operand.hbm [shape: f32[512,128], index: 2, kind: output, shape index: {0}]
  %s3 = inlined_call_operand.hbm [shape: f32[2,128], index: 3, kind: output, shape index: {1}]
  %4 = xla_tuple %s2, %s3
  %s5 = sld [smem:[#allocation0]]
  $region61: #{tpu_custom_call.1} parent=0
    _
  %s7 = ssub.s32 1, %s5
  %s8 = scalar_select 0, %s7, %s5
  $region1: #{tpu_custom_call.1} parent=0
    #allocation2 [shape = 'u8[262144]{0}', space=vmem, size = 0x40000, scoped, tag = 'input window, operand 0']
    #allocation3 [shape = 's32[2]{0}', space=sflag, size = 0x8, scoped, tag = 'scoped memory for tpu_custom_call.1']
    #allocation4 [shape = 's32[2]{0}', space=sflag, size = 0x8, scoped, tag = 'scoped memory for tpu_custom_call.1']
    #allocation5 [shape = 'u8[65536]{0}', space=vmem, size = 0x10000, scoped, tag = 'input window, operand 1, single buffered']
    #allocation6 [shape = 's32[1]{0}', space=sflag, size = 0x4, scoped, tag = 'scoped memory for tpu_custom_call.1']
    #allocation7 [shape = 'u8[131072]{0}', space=vmem, size = 0x20000, scoped, tag = 'output window, operand 0']
    #allocation8 [shape = 'u8[1024]{0}', space=vmem, size = 0x400, scoped, tag = 'output window, operand 1, single buffered']
    #allocation9 [shape = 's32[1]{0}', space=sflag, size = 0x4, scoped, tag = 'scoped memory for tpu_custom_call.1']
    %9 = vsyncpa [#allocation3], 0
    %s10 = scalar_lea.sflag [#allocation3], 1
    %11 = vsyncpa %s10, 0
    %12 = vsyncpa [#allocation6], 0
    %13 = vsyncpa [#allocation4], 0
    %s14 = scalar_lea.sflag [#allocation4], 1
    %15 = vsyncpa %s14, 0
    %16 = vsyncpa [#allocation9], 0
    loop: start=0, step=1, limit=6
    $region2: #{tpu_custom_call.1} parent=1 // loop_pre_header
      _
    $region3: #{tpu_custom_call.1} parent=1 // loop_header
      %s18 = sphi 0, %s22
      %p19 = scmp.ge.s32.totalorder %s18, 6
      %s28 = sphi 0, %s30
      %s31 = sphi 0, %s28
      %s32 = sphi 0, %s31
      %s48 = sphi 0, %s32
      %s52 = sphi 0, %s52
      %s54 = sphi 0, %s52
      %s55 = sphi 0, %s54
      %s69 = sphi 0, %s55
      %s75 = sphi 0, %s77
      %s78 = sphi 0, %s75
      %s79 = sphi 0, %s78
      %s95 = sphi 0, %s79
      %s99 = sphi 0, %s99
      %s101 = sphi 0, %s99
      %s102 = sphi 0, %s101
      %s116 = sphi 0, %s102
    $region4: #{tpu_custom_call.1} parent=1 // loop_header_branch
      %21 = sbr.rel (%p19) target = $region8
    $region5: #{tpu_custom_call.1} parent=1 // loop_body
      %s23 = ssub.s32 %s18, 1
      %s24 = ssub.s32 %s18, 2
      %s25 = sadd.s32 %s18, 1
      %s26 = ssub.s32 %s18, %s25
      %p27 = scmp.eq.s32.totalorder %s26, 0
      %s29 = sadd.s32 %s28, 1
      %s30 = scalar_select %p27, %s28, %s29
      %p33 = pneg %p27
      %p34 = scmp.eq.s32.totalorder %s18, 3
      %p35 = por %p33, %p34
      %p36 = scmp.ne.s32.totalorder %s28, %s31
      %p37 = scmp.eq.s32.totalorder %s18, 0
      %p38 = por %p36, %p37
      %p39 = scmp.ne.s32.totalorder %s28, %s31
      %p40 = scmp.eq.s32.totalorder %s23, 3
      %p41 = por %p39, %p40
      %p42 = scmp.ne.s32.totalorder %s31, %s32
      %p43 = scmp.eq.s32.totalorder %s23, 0
      %p44 = por %p42, %p43
      %p45 = scmp.ne.s32.totalorder %s31, %s32
      %p46 = scmp.eq.s32.totalorder %s24, 3
      %p47 = por %p45, %p46
      %p49 = scmp.ne.s32.totalorder %s32, %s48
      %p50 = scmp.eq.s32.totalorder %s24, 0
      %p51 = por %p49, %p50
      %s53 = sadd.s32 %s52, 1
      %p56 = scmp.eq.s32.totalorder %s18, 3
      %p57 = scmp.ne.s32.totalorder %s52, %s54
      %p58 = scmp.eq.s32.totalorder %s18, 0
      %p59 = por %p57, %p58
      %p60 = scmp.ne.s32.totalorder %s52, %s54
      %p61 = scmp.eq.s32.totalorder %s23, 3
      %p62 = por %p60, %p61
      %p63 = scmp.ne.s32.totalorder %s54, %s55
      %p64 = scmp.eq.s32.totalorder %s23, 0
      %p65 = por %p63, %p64
      %p66 = scmp.ne.s32.totalorder %s54, %s55
      %p67 = scmp.eq.s32.totalorder %s24, 3
      %p68 = por %p66, %p67
      %p70 = scmp.ne.s32.totalorder %s55, %s69
      %p71 = scmp.eq.s32.totalorder %s24, 0
      %p72 = por %p70, %p71
      %s73 = ssub.s32 %s18, %s25
      %p74 = scmp.eq.s32.totalorder %s73, 0
      %s76 = sadd.s32 %s75, 1
      %s77 = scalar_select %p74, %s75, %s76
      %p80 = pneg %p74
      %p81 = scmp.eq.s32.totalorder %s18, 3
      %p82 = por %p80, %p81
      %p83 = scmp.ne.s32.totalorder %s75, %s78
      %p84 = scmp.eq.s32.totalorder %s18, 0
      %p85 = por %p83, %p84
      %p86 = scmp.ne.s32.totalorder %s75, %s78
      %p87 = scmp.eq.s32.totalorder %s23, 3
      %p88 = por %p86, %p87
      %p89 = scmp.ne.s32.totalorder %s78, %s79
      %p90 = scmp.eq.s32.totalorder %s23, 0
      %p91 = por %p89, %p90
      %p92 = scmp.ne.s32.totalorder %s78, %s79
      %p93 = scmp.eq.s32.totalorder %s24, 3
      %p94 = por %p92, %p93
      %p96 = scmp.ne.s32.totalorder %s79, %s95
      %p97 = scmp.eq.s32.totalorder %s24, 0
      %p98 = por %p96, %p97
      %s100 = sadd.s32 %s99, 1
      %p103 = scmp.eq.s32.totalorder %s18, 3
      %p104 = scmp.ne.s32.totalorder %s99, %s101
      %p105 = scmp.eq.s32.totalorder %s18, 0
      %p106 = por %p104, %p105
      %p107 = scmp.ne.s32.totalorder %s99, %s101
      %p108 = scmp.eq.s32.totalorder %s23, 3
      %p109 = por %p107, %p108
      %p110 = scmp.ne.s32.totalorder %s101, %s102
      %p111 = scmp.eq.s32.totalorder %s23, 0
      %p112 = por %p110, %p111
      %p113 = scmp.ne.s32.totalorder %s101, %s102
      %p114 = scmp.eq.s32.totalorder %s24, 3
      %p115 = por %p113, %p114
      %p117 = scmp.ne.s32.totalorder %s102, %s116
      %p118 = scmp.eq.s32.totalorder %s24, 0
      %p119 = por %p117, %p118
      %p120 = scmp.le.s32.totalorder 1, %s18
      %p121 = scmp.lt.s32.totalorder %s18, 5
      %p122 = pnand %p120, %p121
      %p123 = pneg %p122
      // Predicated region
      $region9: #{tpu_custom_call.1} parent=5 // pred_check
        _
      $region10: #{tpu_custom_call.1} parent=5 // pred_check_branch
        %125 = sbr.rel (%p122) target = $region12
      $region11: #{tpu_custom_call.1} parent=5 // pred_region
        %s126 = ssub.s32 %s18, 1
        // Predicated region
        $region13: #{tpu_custom_call.1} parent=11 // pred_check
          %p127 = pneg %p65
        $region14: #{tpu_custom_call.1} parent=11 // pred_check_branch
          %129 = sbr.rel (%p127) target = $region16
        $region15: #{tpu_custom_call.1} parent=11 // pred_region
          %s131 = ssub.s32 2048, 2048
          %132 = vsyncadd [#allocation6], %s131
          %s133 = sshll.u32 [#allocation5], 4
          %s134 = int_to_ptr.vmem [resolvable:$true] %s133
          %139 = dma.hbm_to_vmem [thread:$0]  %s1, 2048, %s134, [#allocation6], 64, 64, 4
        $region16: #{tpu_custom_call.1} parent=11 // pred_fallthru
          _
      $region12: #{tpu_custom_call.1} parent=5 // pred_fallthru
        _
      %p140 = scmp.lt.s32.totalorder %s18, 4
      // Predicated region
      $region17: #{tpu_custom_call.1} parent=5 // pred_check
        %p141 = pneg %p140
      $region18: #{tpu_custom_call.1} parent=5 // pred_check_branch
        %143 = sbr.rel (%p141) target = $region20
      $region19: #{tpu_custom_call.1} parent=5 // pred_region
        // Predicated region
        $region21: #{tpu_custom_call.1} parent=19 // pred_check
          %p144 = pneg %p38
        $region22: #{tpu_custom_call.1} parent=19 // pred_check_branch
          %146 = sbr.rel (%p144) target = $region24
        $region23: #{tpu_custom_call.1} parent=19 // pred_region
          %s147 = sand.u32 %s28, 1
          %s148 = scalar_lea.sflag [#allocation3], %s147
          %s149 = sand.u32 %s28, 1
          %s150 = smul.addr %s149, 256
          %s151 = scalar_lea.vmem [#allocation2], %s150
          %s152 = smul.u32 16, %s18
          %s154 = ssub.s32 4096, 4096
          %155 = vsyncadd %s148, %s154
          %s156 = smul.addr %s152, 2
          %s157 = smul.addr %s156, 128
          %s158 = scalar_lea.hbm %s0, %s157
          %s159 = sshll.u32 %s151, 4
          %s160 = int_to_ptr.vmem [resolvable:$true] %s159
          %165 = dma.hbm_to_vmem [thread:$0]  %s158, 4096, %s160, %s148, 256, 256, 16
        $region24: #{tpu_custom_call.1} parent=19 // pred_fallthru
          _
      $region20: #{tpu_custom_call.1} parent=5 // pred_fallthru
        _
      %p166 = scmp.le.s32.totalorder 1, %s18
      %p167 = scmp.lt.s32.totalorder %s18, 5
      %p168 = pnand %p166, %p167
      %p169 = pneg %p168
      // Predicated region
      $region25: #{tpu_custom_call.1} parent=5 // pred_check
        _
      $region26: #{tpu_custom_call.1} parent=5 // pred_check_branch
        %171 = sbr.rel (%p168) target = $region28
      $region27: #{tpu_custom_call.1} parent=5 // pred_region
        %s172 = ssub.s32 %s18, 1
        %s173 = sand.u32 %s31, 1
        %s174 = scalar_lea.sflag [#allocation3], %s173
        %s175 = sand.u32 %s31, 1
        %s176 = smul.addr %s175, 256
        %s177 = scalar_lea.vmem [#allocation2], %s176
        // Predicated region
        $region29: #{tpu_custom_call.1} parent=27 // pred_check
          %p178 = pneg %p44
        $region30: #{tpu_custom_call.1} parent=27 // pred_check_branch
          %180 = sbr.rel (%p178) target = $region32
        $region31: #{tpu_custom_call.1} parent=27 // pred_region
          %181 = dma.done %s174, 4096
        $region32: #{tpu_custom_call.1} parent=27 // pred_fallthru
          _
        // Predicated region
        $region33: #{tpu_custom_call.1} parent=27 // pred_check
          %p182 = pneg %p65
        $region34: #{tpu_custom_call.1} parent=27 // pred_check_branch
          %184 = sbr.rel (%p182) target = $region36
        $region35: #{tpu_custom_call.1} parent=27 // pred_region
          %185 = dma.done [#allocation6], 2048
        $region36: #{tpu_custom_call.1} parent=27 // pred_fallthru
          _
        %s186 = sand.u32 %s31, 1
        %s187 = scalar_lea.sflag [#allocation3], %s186
        %s188 = sand.u32 %s31, 1
        %s189 = smul.addr %s188, 256
        %s190 = scalar_lea.vmem [#allocation2], %s189
        %p191 = pneg %p44
        %p192 = pneg %p41
        %p193 = pneg %p65
        %p194 = pneg %p62
        %p195 = pneg %p91
        %p196 = pneg %p88
        %s197 = sand.u32 %s78, 1
        %s198 = scalar_lea.sflag [#allocation4], %s197
        %s199 = sand.u32 %s78, 1
        %s200 = smul.addr %s199, 128
        %s201 = scalar_lea.vmem [#allocation7], %s200
        %p202 = pneg %p112
        %p203 = pneg %p109
        %s204 = smul.u32 16, %s23
        %s205 = smul.u32 16, %s23
        %v207 = vld [vmem:[%s177] sm:$0xff]
        %v208 = vld [vmem:[%s177 + $0x8] sm:$0xff]
        %v209 = vld [vmem:[%s177 + $0x10] sm:$0xff]
        %v210 = vld [vmem:[%s177 + $0x18] sm:$0xff]
        %v211 = vld [vmem:[%s177 + $0x20] sm:$0xff]
        %v212 = vld [vmem:[%s177 + $0x28] sm:$0xff]
        %v213 = vld [vmem:[%s177 + $0x30] sm:$0xff]
        %v214 = vld [vmem:[%s177 + $0x38] sm:$0xff]
        %v215 = vld [vmem:[%s177 + $0x40] sm:$0xff]
        %v216 = vld [vmem:[%s177 + $0x48] sm:$0xff]
        %v217 = vld [vmem:[%s177 + $0x50] sm:$0xff]
        %v218 = vld [vmem:[%s177 + $0x58] sm:$0xff]
        %v219 = vld [vmem:[%s177 + $0x60] sm:$0xff]
        %v220 = vld [vmem:[%s177 + $0x68] sm:$0xff]
        %v221 = vld [vmem:[%s177 + $0x70] sm:$0xff]
        %v222 = vld [vmem:[%s177 + $0x78] sm:$0xff]
        %v223 = vld [vmem:[%s177 + $0x80] sm:$0xff]
        %v224 = vld [vmem:[%s177 + $0x88] sm:$0xff]
        %v225 = vld [vmem:[%s177 + $0x90] sm:$0xff]
        %v226 = vld [vmem:[%s177 + $0x98] sm:$0xff]
        %v227 = vld [vmem:[%s177 + $0xa0] sm:$0xff]
        %v228 = vld [vmem:[%s177 + $0xa8] sm:$0xff]
        %v229 = vld [vmem:[%s177 + $0xb0] sm:$0xff]
        %v230 = vld [vmem:[%s177 + $0xb8] sm:$0xff]
        %v231 = vld [vmem:[%s177 + $0xc0] sm:$0xff]
        %v232 = vld [vmem:[%s177 + $0xc8] sm:$0xff]
        %v233 = vld [vmem:[%s177 + $0xd0] sm:$0xff]
        %v234 = vld [vmem:[%s177 + $0xd8] sm:$0xff]
        %v235 = vld [vmem:[%s177 + $0xe0] sm:$0xff]
        %v236 = vld [vmem:[%s177 + $0xe8] sm:$0xff]
        %v237 = vld [vmem:[%s177 + $0xf0] sm:$0xff]
        %v238 = vld [vmem:[%s177 + $0xf8] sm:$0xff]
        %v239 = vpack.c.bf16 %v209, %v207
        %v240 = vpack.c.bf16 %v210, %v208
        %v241 = vpack.c.bf16 %v213, %v211
        %v242 = vpack.c.bf16 %v214, %v212
        %v243 = vpack.c.bf16 %v217, %v215
        %v244 = vpack.c.bf16 %v218, %v216
        %v245 = vpack.c.bf16 %v221, %v219
        %v246 = vpack.c.bf16 %v222, %v220
        %v247 = vpack.c.bf16 %v225, %v223
        %v248 = vpack.c.bf16 %v226, %v224
        %v249 = vpack.c.bf16 %v229, %v227
        %v250 = vpack.c.bf16 %v230, %v228
        %v251 = vpack.c.bf16 %v233, %v231
        %v252 = vpack.c.bf16 %v234, %v232
        %v253 = vpack.c.bf16 %v237, %v235
        %v254 = vpack.c.bf16 %v238, %v236
        %v255 = vld [vmem:[#allocation5] sm:$0xf]
        %v256 = vld [vmem:[#allocation5 + $0x4] sm:$0xf]
        %v257 = vld [vmem:[#allocation5 + $0x8] sm:$0xf]
        %v258 = vld [vmem:[#allocation5 + $0xc] sm:$0xf]
        %v259 = vld [vmem:[#allocation5 + $0x10] sm:$0xf]
        %v260 = vld [vmem:[#allocation5 + $0x14] sm:$0xf]
        %v261 = vld [vmem:[#allocation5 + $0x18] sm:$0xf]
        %v262 = vld [vmem:[#allocation5 + $0x1c] sm:$0xf]
        %v263 = vld [vmem:[#allocation5 + $0x20] sm:$0xf]
        %v264 = vld [vmem:[#allocation5 + $0x24] sm:$0xf]
        %v265 = vld [vmem:[#allocation5 + $0x28] sm:$0xf]
        %v266 = vld [vmem:[#allocation5 + $0x2c] sm:$0xf]
        %v267 = vld [vmem:[#allocation5 + $0x30] sm:$0xf]
        %v268 = vld [vmem:[#allocation5 + $0x34] sm:$0xf]
        %v269 = vld [vmem:[#allocation5 + $0x38] sm:$0xf]
        %v270 = vld [vmem:[#allocation5 + $0x3c] sm:$0xf]
        %v271 = vld [vmem:[#allocation5 + $0x40] sm:$0xf]
        %v272 = vld [vmem:[#allocation5 + $0x44] sm:$0xf]
        %v273 = vld [vmem:[#allocation5 + $0x48] sm:$0xf]
        %v274 = vld [vmem:[#allocation5 + $0x4c] sm:$0xf]
        %v275 = vld [vmem:[#allocation5 + $0x50] sm:$0xf]
        %v276 = vld [vmem:[#allocation5 + $0x54] sm:$0xf]
        %v277 = vld [vmem:[#allocation5 + $0x58] sm:$0xf]
        %v278 = vld [vmem:[#allocation5 + $0x5c] sm:$0xf]
        %v279 = vld [vmem:[#allocation5 + $0x60] sm:$0xf]
        %v280 = vld [vmem:[#allocation5 + $0x64] sm:$0xf]
        %v281 = vld [vmem:[#allocation5 + $0x68] sm:$0xf]
        %v282 = vld [vmem:[#allocation5 + $0x6c] sm:$0xf]
        %v283 = vld [vmem:[#allocation5 + $0x70] sm:$0xf]
        %v284 = vld [vmem:[#allocation5 + $0x74] sm:$0xf]
        %v285 = vld [vmem:[#allocation5 + $0x78] sm:$0xf]
        %v286 = vld [vmem:[#allocation5 + $0x7c] sm:$0xf]
        %v319 = vunpack.c.l.b16 %v255
        %v320 = vunpack.c.l.b16 %v256
        %v321 = vunpack.c.l.b16 %v257
        %v322 = vunpack.c.l.b16 %v258
        %v323 = vunpack.c.l.b16 %v259
        %v324 = vunpack.c.l.b16 %v260
        %v325 = vunpack.c.l.b16 %v261
        %v326 = vunpack.c.l.b16 %v262
        %v327 = vunpack.c.l.b16 %v263
        %v328 = vunpack.c.l.b16 %v264
        %v329 = vunpack.c.l.b16 %v265
        %v330 = vunpack.c.l.b16 %v266
        %v331 = vunpack.c.l.b16 %v267
        %v332 = vunpack.c.l.b16 %v268
        %v333 = vunpack.c.l.b16 %v269
        %v334 = vunpack.c.l.b16 %v270
        %v335 = vunpack.c.l.b16 %v271
        %v336 = vunpack.c.l.b16 %v272
        %v337 = vunpack.c.l.b16 %v273
        %v338 = vunpack.c.l.b16 %v274
        %v339 = vunpack.c.l.b16 %v275
        %v340 = vunpack.c.l.b16 %v276
        %v341 = vunpack.c.l.b16 %v277
        %v342 = vunpack.c.l.b16 %v278
        %v343 = vunpack.c.l.b16 %v279
        %v344 = vunpack.c.l.b16 %v280
        %v345 = vunpack.c.l.b16 %v281
        %v346 = vunpack.c.l.b16 %v282
        %v347 = vunpack.c.l.b16 %v283
        %v348 = vunpack.c.l.b16 %v284
        %v349 = vunpack.c.l.b16 %v285
        %v350 = vunpack.c.l.b16 %v286
        %v351 = vpack.c.b16 %v320, %v319
        %v352 = vpack.c.b16 %v322, %v321
        %v353 = vpack.c.b16 %v324, %v323
        %v354 = vpack.c.b16 %v326, %v325
        %v355 = vpack.c.b16 %v328, %v327
        %v356 = vpack.c.b16 %v330, %v329
        %v357 = vpack.c.b16 %v332, %v331
        %v358 = vpack.c.b16 %v334, %v333
        %v359 = vpack.c.b16 %v336, %v335
        %v360 = vpack.c.b16 %v338, %v337
        %v361 = vpack.c.b16 %v340, %v339
        %v362 = vpack.c.b16 %v342, %v341
        %v363 = vpack.c.b16 %v344, %v343
        %v364 = vpack.c.b16 %v346, %v345
        %v365 = vpack.c.b16 %v348, %v347
        %v366 = vpack.c.b16 %v350, %v349
        %383 = vmatprep.subr.bf16.mxu0 0
        %384 = vmatpush1.bf16.msra.mxu0 %v351
        %385 = vmatprep.subr.bf16.mxu0 0
        %386 = vmatpush1.bf16.msra.mxu0 %v352
        %387 = vmatprep.subr.bf16.mxu0 0
        %388 = vmatpush1.bf16.msra.mxu0 %v353
        %389 = vmatprep.subr.bf16.mxu0 0
        %390 = vmatpush1.bf16.msra.mxu0 %v354
        %391 = vmatprep.subr.bf16.mxu0 0
        %392 = vmatpush1.bf16.msra.mxu0 %v355
        %393 = vmatprep.subr.bf16.mxu0 0
        %394 = vmatpush1.bf16.msra.mxu0 %v356
        %395 = vmatprep.subr.bf16.mxu0 0
        %396 = vmatpush1.bf16.msra.mxu0 %v357
        %397 = vmatprep.subr.bf16.mxu0 0
        %398 = vmatpush1.bf16.msra.mxu0 %v358
        %399 = vmatprep.subr.bf16.mxu0 0
        %400 = vmatpush1.bf16.msra.mxu0 %v359
        %401 = vmatprep.subr.bf16.mxu0 0
        %402 = vmatpush1.bf16.msra.mxu0 %v360
        %403 = vmatprep.subr.bf16.mxu0 0
        %404 = vmatpush1.bf16.msra.mxu0 %v361
        %405 = vmatprep.subr.bf16.mxu0 0
        %406 = vmatpush1.bf16.msra.mxu0 %v362
        %407 = vmatprep.subr.bf16.mxu0 0
        %408 = vmatpush1.bf16.msra.mxu0 %v363
        %409 = vmatprep.subr.bf16.mxu0 0
        %410 = vmatpush1.bf16.msra.mxu0 %v364
        %411 = vmatprep.subr.bf16.mxu0 0
        %412 = vmatpush1.bf16.msra.mxu0 %v365
        %413 = vmatprep.subr.bf16.mxu0 0
        %414 = vmatpush1.bf16.msra.mxu0 %v366
        %415 = vmatprep.mubr.bf16.mxu0 %v240
        %416 = vmatmul.mubr.bf16.gmra.mrb[0].mxu0 %v239
        %v417 = vpop.f32.mrb[0].mxu0
        %v418 = vadd.f32 0.0, %v417
        %v419 = vpop.f32.mrb[0].mxu0
        %v420 = vpop.f32.mrb[0].mxu0
        %v421 = vadd.f32 0.0, %v420
        %v422 = vpop.f32.mrb[0].mxu0
        %423 = vmatprep.mubr.bf16.mxu0 %v242
        %424 = vmatmul.mubr.bf16.gmra.mrb[0].mxu0 %v241
        %v425 = vpop.f32.mrb[0].mxu0
        %v426 = vadd.f32 0.0, %v425
        %v427 = vpop.f32.mrb[0].mxu0
        %v428 = vpop.f32.mrb[0].mxu0
        %v429 = vadd.f32 0.0, %v428
        %v430 = vpop.f32.mrb[0].mxu0
        %431 = vmatprep.mubr.bf16.mxu0 %v244
        %432 = vmatmul.mubr.bf16.gmra.mrb[0].mxu0 %v243
        %v433 = vpop.f32.mrb[0].mxu0
        %v434 = vadd.f32 0.0, %v433
        %v435 = vpop.f32.mrb[0].mxu0
        %v436 = vpop.f32.mrb[0].mxu0
        %v437 = vadd.f32 0.0, %v436
        %v438 = vpop.f32.mrb[0].mxu0
        %439 = vmatprep.mubr.bf16.mxu0 %v246
        %440 = vmatmul.mubr.bf16.gmra.mrb[0].mxu0 %v245
        %v441 = vpop.f32.mrb[0].mxu0
        %v442 = vadd.f32 0.0, %v441
        %v443 = vpop.f32.mrb[0].mxu0
        %v444 = vpop.f32.mrb[0].mxu0
        %v445 = vadd.f32 0.0, %v444
        %v446 = vpop.f32.mrb[0].mxu0
        %447 = vmatprep.mubr.bf16.mxu0 %v248
        %448 = vmatmul.mubr.bf16.gmra.mrb[0].mxu0 %v247
        %v449 = vpop.f32.mrb[0].mxu0
        %v450 = vadd.f32 0.0, %v449
        %v451 = vpop.f32.mrb[0].mxu0
        %v452 = vpop.f32.mrb[0].mxu0
        %v453 = vadd.f32 0.0, %v452
        %v454 = vpop.f32.mrb[0].mxu0
        %455 = vmatprep.mubr.bf16.mxu0 %v250
        %456 = vmatmul.mubr.bf16.gmra.mrb[0].mxu0 %v249
        %v457 = vpop.f32.mrb[0].mxu0
        %v458 = vadd.f32 0.0, %v457
        %v459 = vpop.f32.mrb[0].mxu0
        %v460 = vpop.f32.mrb[0].mxu0
        %v461 = vadd.f32 0.0, %v460
        %v462 = vpop.f32.mrb[0].mxu0
        %463 = vmatprep.mubr.bf16.mxu0 %v252
        %464 = vmatmul.mubr.bf16.gmra.mrb[0].mxu0 %v251
        %v465 = vpop.f32.mrb[0].mxu0
        %v466 = vadd.f32 0.0, %v465
        %v467 = vpop.f32.mrb[0].mxu0
        %v468 = vpop.f32.mrb[0].mxu0
        %v469 = vadd.f32 0.0, %v468
        %v470 = vpop.f32.mrb[0].mxu0
        %471 = vmatprep.mubr.bf16.mxu0 %v254
        %472 = vmatmul.mubr.bf16.gmra.mrb[0].mxu0 %v253
        %v473 = vpop.f32.mrb[0].mxu0
        %v474 = vadd.f32 0.0, %v473
        %v475 = vpop.f32.mrb[0].mxu0
        %v476 = vpop.f32.mrb[0].mxu0
        %v477 = vadd.f32 0.0, %v476
        %v478 = vpop.f32.mrb[0].mxu0
        %479 = vdwg.mxu0
        %480 = vst [vmem:[%s201] sm:$0xff] %v418
        %481 = vst [vmem:[%s201 + $0x8] sm:$0xff] %v421
        %482 = vst [vmem:[%s201 + $0x10] sm:$0xff] %v426
        %483 = vst [vmem:[%s201 + $0x18] sm:$0xff] %v429
        %484 = vst [vmem:[%s201 + $0x20] sm:$0xff] %v434
        %485 = vst [vmem:[%s201 + $0x28] sm:$0xff] %v437
        %486 = vst [vmem:[%s201 + $0x30] sm:$0xff] %v442
        %487 = vst [vmem:[%s201 + $0x38] sm:$0xff] %v445
        %488 = vst [vmem:[%s201 + $0x40] sm:$0xff] %v450
        %489 = vst [vmem:[%s201 + $0x48] sm:$0xff] %v453
        %490 = vst [vmem:[%s201 + $0x50] sm:$0xff] %v458
        %491 = vst [vmem:[%s201 + $0x58] sm:$0xff] %v461
        %492 = vst [vmem:[%s201 + $0x60] sm:$0xff] %v466
        %493 = vst [vmem:[%s201 + $0x68] sm:$0xff] %v469
        %494 = vst [vmem:[%s201 + $0x70] sm:$0xff] %v474
        %495 = vst [vmem:[%s201 + $0x78] sm:$0xff] %v477
        %p496 = scmp.eq.s32.totalorder %s23, 0
        // Predicated region
        $region37: #{tpu_custom_call.1} parent=27 // pred_check
          %p497 = pneg %p496
        $region38: #{tpu_custom_call.1} parent=27 // pred_check_branch
          %499 = sbr.rel (%p497) target = $region40
        $region39: #{tpu_custom_call.1} parent=27 // pred_region
          %500 = vst [vmem:[#allocation8] sm:$0x3] 0.0
        $region40: #{tpu_custom_call.1} parent=27 // pred_fallthru
          _
        %v501 = vadd.f32 %v418, %v421
        %v502 = vadd.f32 %v501, %v426
        %v503 = vadd.f32 %v502, %v429
        %v504 = vadd.f32 %v503, %v434
        %v505 = vadd.f32 %v504, %v437
        %v506 = vadd.f32 %v505, %v442
        %v507 = vadd.f32 %v506, %v445
        %v508 = vadd.f32 %v507, %v450
        %v509 = vadd.f32 %v508, %v453
        %v510 = vadd.f32 %v509, %v458
        %v511 = vadd.f32 %v510, %v461
        %v512 = vadd.f32 %v511, %v466
        %v513 = vadd.f32 %v512, %v469
        %v514 = vadd.f32 %v513, %v474
        %v515 = vadd.f32 %v514, %v477
        %v516 = vrot.slane %v515, 4
        %v517 = vadd.f32 %v515, %v516
        %v518 = vrot.slane %v517, 2
        %v519 = vadd.f32 %v517, %v518
        %v520 = vrot.slane %v519, 1
        %v521 = vadd.f32 %v519, %v520
        %v522 = vmul.f32 %v418, %v418
        %v523 = vmul.f32 %v421, %v421
        %v524 = vmul.f32 %v426, %v426
        %v525 = vmul.f32 %v429, %v429
        %v526 = vmul.f32 %v434, %v434
        %v527 = vmul.f32 %v437, %v437
        %v528 = vmul.f32 %v442, %v442
        %v529 = vmul.f32 %v445, %v445
        %v530 = vmul.f32 %v450, %v450
        %v531 = vmul.f32 %v453, %v453
        %v532 = vmul.f32 %v458, %v458
        %v533 = vmul.f32 %v461, %v461
        %v534 = vmul.f32 %v466, %v466
        %v535 = vmul.f32 %v469, %v469
        %v536 = vmul.f32 %v474, %v474
        %v537 = vmul.f32 %v477, %v477
        %v538 = vadd.f32 %v522, %v523
        %v539 = vadd.f32 %v538, %v524
        %v540 = vadd.f32 %v539, %v525
        %v541 = vadd.f32 %v540, %v526
        %v542 = vadd.f32 %v541, %v527
        %v543 = vadd.f32 %v542, %v528
        %v544 = vadd.f32 %v543, %v529
        %v545 = vadd.f32 %v544, %v530
        %v546 = vadd.f32 %v545, %v531
        %v547 = vadd.f32 %v546, %v532
        %v548 = vadd.f32 %v547, %v533
        %v549 = vadd.f32 %v548, %v534
        %v550 = vadd.f32 %v549, %v535
        %v551 = vadd.f32 %v550, %v536
        %v552 = vadd.f32 %v551, %v537
        %v553 = vrot.slane %v552, 4
        %v554 = vadd.f32 %v552, %v553
        %v555 = vrot.slane %v554, 2
        %v556 = vadd.f32 %v554, %v555
        %v557 = vrot.slane %v556, 1
        %v558 = vadd.f32 %v556, %v557
        %v559 = vld [vmem:[#allocation8] sm:$0x3]
        %vm560 = vcmask 1040384
        %v561 = vsel %vm560, %v521, %v558
        %v562 = vadd.f32 %v559, %v561
        %563 = vst [vmem:[#allocation8] sm:$0x3] %v562
        %s564 = sand.u32 %s78, 1
        %s565 = scalar_lea.sflag [#allocation4], %s564
        %s566 = sand.u32 %s78, 1
        %s567 = smul.addr %s566, 128
        %s568 = scalar_lea.vmem [#allocation7], %s567
        // Predicated region
        $region41: #{tpu_custom_call.1} parent=27 // pred_check
          %p569 = pneg %p88
        $region42: #{tpu_custom_call.1} parent=27 // pred_check_branch
          %571 = sbr.rel (%p569) target = $region44
        $region43: #{tpu_custom_call.1} parent=27 // pred_region
          %s572 = smul.u32 16, %s23
          %s574 = ssub.s32 2048, 2048
          %575 = vsyncadd %s565, %s574
          %s576 = smul.addr %s572, 128
          %s577 = scalar_lea.hbm %s2, %s576
          %s578 = sshll.u32 %s568, 4
          %s579 = int_to_ptr.vmem [resolvable:$true] %s578
          %584 = dma.vmem_to_hbm [thread:$0]  %s579, 2048, %s577, %s565, 128, 128, 8
        $region44: #{tpu_custom_call.1} parent=27 // pred_fallthru
          _
        // Predicated region
        $region45: #{tpu_custom_call.1} parent=27 // pred_check
          %p585 = pneg %p109
        $region46: #{tpu_custom_call.1} parent=27 // pred_check_branch
          %587 = sbr.rel (%p585) target = $region48
        $region47: #{tpu_custom_call.1} parent=27 // pred_region
          %s589 = ssub.s32 32, 32
          %590 = vsyncadd [#allocation9], %s589
          %s592 = sshll.u32 [#allocation8], 4
          %s593 = int_to_ptr.vmem [resolvable:$true] %s592
          %595 = dma.vmem_to_hbm [thread:$0]  %s593, 32, %s3, [#allocation9]
        $region48: #{tpu_custom_call.1} parent=27 // pred_fallthru
          _
        // Predicated region
        $region49: #{tpu_custom_call.1} parent=27 // pred_check
          %p596 = pneg %p109
        $region50: #{tpu_custom_call.1} parent=27 // pred_check_branch
          %598 = sbr.rel (%p596) target = $region52
        $region51: #{tpu_custom_call.1} parent=27 // pred_region
          %599 = dma.done [#allocation9], 32
        $region52: #{tpu_custom_call.1} parent=27 // pred_fallthru
          _
      $region28: #{tpu_custom_call.1} parent=5 // pred_fallthru
        _
      %p600 = scmp.le.s32.totalorder 2, %s18
      // Predicated region
      $region53: #{tpu_custom_call.1} parent=5 // pred_check
        %p601 = pneg %p600
      $region54: #{tpu_custom_call.1} parent=5 // pred_check_branch
        %603 = sbr.rel (%p601) target = $region56
      $region55: #{tpu_custom_call.1} parent=5 // pred_region
        %s604 = ssub.s32 %s18, 2
        // Predicated region
        $region57: #{tpu_custom_call.1} parent=55 // pred_check
          %p605 = pneg %p94
        $region58: #{tpu_custom_call.1} parent=55 // pred_check_branch
          %607 = sbr.rel (%p605) target = $region60
        $region59: #{tpu_custom_call.1} parent=55 // pred_region
          %s608 = sand.u32 %s79, 1
          %s609 = scalar_lea.sflag [#allocation4], %s608
          %s610 = sand.u32 %s79, 1
          %s611 = smul.addr %s610, 128
          %s612 = scalar_lea.vmem [#allocation7], %s611
          %613 = dma.done %s609, 2048
        $region60: #{tpu_custom_call.1} parent=55 // pred_fallthru
          _
      $region56: #{tpu_custom_call.1} parent=5 // pred_fallthru
        _
    $region6: #{tpu_custom_call.1} parent=1 // loop_footer
      %s22 = sadd.s32 1, %s18
    $region7: #{tpu_custom_call.1} parent=1 // loop_footer_branch
      %17 = sbr.rel target = $region3
    $region8: #{tpu_custom_call.1} parent=1 // loop_exit
      _
    %614 = vsyncpa [#allocation3], 1
    %s615 = scalar_lea.sflag [#allocation3], 1
    %616 = vsyncpa %s615, 1
    %617 = vsyncpa [#allocation6], 1
    %618 = vsyncpa [#allocation4], 1
    %s619 = scalar_lea.sflag [#allocation4], 1
    %620 = vsyncpa %s619, 1
    %621 = vsyncpa [#allocation9], 1

</llo_original>
